<compile_context>
chip_gen: v7x
topology: tpu7x:2x2x1
jax: 0.10.0
libtpu: 0.0.40
codegen_flags: <defaults>
</compile_context>

<pallas_src>
import functools

import jax
import jax.numpy as jnp
from jax.experimental import pallas as pl
from jax.experimental.pallas import tpu as pltpu

LANES = 128
SUBLANES = 8
NUM_CORES = 2  # leading "parallel" axis; uses both v7x TensorCores, harmless on 1-TC chips


def _combined_loss_kernel(pr_ref, gt_ref, acc_ref, *,
                          block_rows, n, nb, steps, eps):
    c = pl.program_id(0)          # core / parallel axis
    i = pl.program_id(1)          # streaming (reduction) axis
    b = c * steps + i             # global block index (may exceed nb-1 for the clamped tail)

    @pl.when(i == 0)
    def _init():
        acc_ref[...] = jnp.zeros_like(acc_ref)

    r = block_rows // SUBLANES

    def fold(x):  # (block_rows, 128) -> (8, 128), pure VPU adds
        return x.reshape(r, SUBLANES, LANES).sum(axis=0)

    # Skip duplicate (index-clamped) blocks past the real block count.
    @pl.when(b < nb)
    def _accumulate():
        pr = pr_ref[...].astype(jnp.float32)
        gt = gt_ref[...].astype(jnp.float32)

        base = b * (block_rows * LANES)
        fully_valid = (base + block_rows * LANES) <= n

        # ---- hot path: every element of this block is a real element --------
        @pl.when(fully_valid)
        def _fast():
            pr_c = jnp.clip(pr, eps, 1.0 - eps)
            p_true = jnp.where(gt > 0.5, pr_c, 1.0 - pr_c)  # gt is binary -> single log
            acc_ref[0, 0] += fold(-jnp.log(p_true))
            acc_ref[0, 1] += fold(pr * gt)
            acc_ref[0, 2] += fold(pr + gt)

        # ---- tail path (at most one block total): mask padded / undefined ---
        @pl.when(jnp.logical_not(fully_valid))
        def _masked():
            rem = n - base  # elements of this block that are real (scalar)
            row = jax.lax.broadcasted_iota(jnp.int32, (block_rows, LANES), 0)
            lane = jax.lax.broadcasted_iota(jnp.int32, (block_rows, LANES), 1)
            valid = (row * LANES + lane) < rem

            pr_c = jnp.clip(pr, eps, 1.0 - eps)
            p_true = jnp.where(gt > 0.5, pr_c, 1.0 - pr_c)
            p_true = jnp.where(valid, p_true, 1.0)  # log(1)=0 for padded lanes
            pr_m = jnp.where(valid, pr, 0.0)
            gt_m = jnp.where(valid, gt, 0.0)

            acc_ref[0, 0] += fold(-jnp.log(p_true))
            acc_ref[0, 1] += fold(pr_m * gt_m)
            acc_ref[0, 2] += fold(pr_m + gt_m)


def combined_loss(pr, gt, *, eps=1e-6, smooth=1.0,
                  bce_loss_weight=0.25, dice_loss_weight=0.75):
    # TODO(synk): the PyTorch module's runtime assert that gt is exactly {0,1} is
    # assumed here (data-dependent asserts have no clean in-kernel equivalent);
    # the single-log BCE is only exact for binary gt.
    assert pr.shape == gt.shape, "Prediction and ground truth must have the same shape"

    n = pr.size
    chunk = SUBLANES * LANES
    assert n < 2**31 - chunk, "int32 flat indexing limits inputs to < 2^31 elements"

    pr_flat = jnp.ravel(pr)   # native dtype; cast per-tile in the kernel
    gt_flat = jnp.ravel(gt)

    # Pad only up to the next multiple of 8*128 (tiny); the padded tail and any
    # Pallas block-padding are masked in-kernel via the tail path.
    padded = max(chunk, ((n + chunk - 1) // chunk) * chunk)
    if padded != n:
        pr_flat = jnp.pad(pr_flat, (0, padded - n))
        gt_flat = jnp.pad(gt_flat, (0, padded - n))

    rows = padded // LANES                 # multiple of 8
    pr2 = pr_flat.reshape(rows, LANES)
    gt2 = gt_flat.reshape(rows, LANES)

    # Block size: 2 MiB per input per buffer regardless of dtype.
    itemsize = max(jnp.dtype(pr.dtype).itemsize, jnp.dtype(gt.dtype).itemsize)
    target_rows = 8192 if itemsize <= 2 else 4096
    block_rows = min(target_rows, rows)    # both multiples of 8

    nb = pl.cdiv(rows, block_rows)         # real number of row-blocks
    steps = pl.cdiv(nb, NUM_CORES)         # blocks per core
    grid = (NUM_CORES, steps)

    def in_map(c, i):
        # Clamp so the DMA always targets a real block; clamped duplicates are
        # skipped inside the kernel (b >= nb).
        return (jnp.minimum(c * steps + i, nb - 1), 0)

    in_blk = pl.BlockSpec((block_rows, LANES), in_map)
    out_blk = pl.BlockSpec((1, 3, SUBLANES, LANES), lambda c, i: (c, 0, 0, 0))

    kernel = functools.partial(
        _combined_loss_kernel,
        block_rows=block_rows, n=n, nb=nb, steps=steps, eps=float(eps))

    parts = pl.pallas_call(
        kernel,
        out_shape=jax.ShapeDtypeStruct((NUM_CORES, 3, SUBLANES, LANES), jnp.float32),
        grid_spec=pltpu.PrefetchScalarGridSpec(
            num_scalar_prefetch=0,
            grid=grid,
            in_specs=[in_blk, in_blk],
            out_specs=out_blk,
        ),
        compiler_params=pltpu.CompilerParams(
            dimension_semantics=("parallel", "arbitrary")),
    )(pr2, gt2)

    # Cheap finalize in plain JAX on the (NUM_CORES, 3, 8, 128) partials.
    sums = jnp.sum(parts, axis=(0, 2, 3))          # (3,) = [bce_sum, intersection, pr_sum+gt_sum]
    bce_mean = sums[0] / float(n)
    dice = 1.0 - (2.0 * sums[1] + float(smooth)) / (sums[2] + float(smooth))
    return float(bce_loss_weight) * bce_mean + float(dice_loss_weight) * dice


def _reference_loss(pr, gt, *, eps=1e-6, smooth=1.0, w_bce=0.25, w_dice=0.75):
    pr = pr.astype(jnp.float32)
    gt = gt.astype(jnp.float32)
    pr_c = jnp.clip(pr, eps, 1.0 - eps)
    bce = jnp.mean(-(gt * jnp.log(pr_c) + (1.0 - gt) * jnp.log(1.0 - pr_c)))
    inter = jnp.sum(pr * gt)
    dice = 1.0 - (2.0 * inter + smooth) / (jnp.sum(pr) + jnp.sum(gt) + smooth)
    return w_bce * bce + w_dice * dice


if __name__ == "__main__":
    key = jax.random.PRNGKey(0)

    # 1) NCHW inputs, like the PyTorch module expects: (batch, channels, H, W)
    k1, k2 = jax.random.split(key)
    shape = (2, 4, 16, 16)
    pr = jax.random.uniform(k1, shape, dtype=jnp.float32)           # predictions in (0, 1)
    gt = (jax.random.uniform(k2, shape) > 0.5).astype(jnp.float32)  # binary ground truth

    loss = jax.block_until_ready(combined_loss(pr, gt))
    ref = jax.block_until_ready(_reference_loss(pr, gt))
    assert jnp.allclose(loss, ref, rtol=1e-5, atol=1e-5), (loss, ref)

    # 2) Non-128-aligned size exercises wrapper padding + in-kernel tail masking.
    k3, k4 = jax.random.split(k1)
    shape2 = (3, 1, 7, 5)
    pr2 = jax.random.uniform(k3, shape2, dtype=jnp.float32)
    gt2 = (jax.random.uniform(k4, shape2) > 0.5).astype(jnp.float32)

    loss2 = jax.block_until_ready(combined_loss(pr2, gt2))
    ref2 = jax.block_until_ready(_reference_loss(pr2, gt2))
    assert jnp.allclose(loss2, ref2, rtol=1e-5, atol=1e-5), (loss2, ref2)

    # 3) Multi-block size (> 4096 rows) exercises both cores of the parallel axis,
    #    the fast unmasked path, and a Pallas-padded partial last block.
    k5, k6 = jax.random.split(k2)
    shape3 = (2, 4, 256, 260)   # 532480 elements -> 4160 rows -> 2 blocks
    pr3 = jax.random.uniform(k5, shape3, dtype=jnp.float32)
    gt3 = (jax.random.uniform(k6, shape3) > 0.5).astype(jnp.float32)

    loss3 = jax.block_until_ready(combined_loss(pr3, gt3))
    ref3 = jax.block_until_ready(_reference_loss(pr3, gt3))
    assert jnp.allclose(loss3, ref3, rtol=1e-4, atol=1e-5), (loss3, ref3)

    print("KERNEL_OK")
</pallas_src>

<mosaic_0001>
module attributes {stable_mosaic.version = 11 : i64} {
  func.func @_combined_loss_kernel(%arg0: i32, %arg1: i32, %arg2: memref<16x128xf32, #tpu.memory_space<vmem>>, %arg3: memref<16x128xf32, #tpu.memory_space<vmem>>, %arg4: memref<1x3x8x128xf32, #tpu.memory_space<vmem>>) attributes {dimension_semantics = [#tpu.dimension_semantics<parallel>, #tpu.dimension_semantics<arbitrary>], iteration_bounds = array<i64: 2, 1>, scalar_prefetch = 0 : i64, scratch_operands = 0 : i64, tpu.core_type = #tpu.core_type<tc>, window_params = [{transform_indices = @transform_0, window_bounds = array<i64: 16, 128>}, {transform_indices = @transform_1, window_bounds = array<i64: 16, 128>}, {transform_indices = @transform_2, window_bounds = array<i64: 1, 3, 8, 128>}]} {
    %c1_i32 = arith.constant 1 : i32
    %0 = arith.muli %arg0, %c1_i32 : i32
    %1 = arith.addi %0, %arg1 : i32
    %c0_i32 = arith.constant 0 : i32
    %2 = arith.cmpi eq, %arg1, %c0_i32 : i32
    %3 = arith.extui %2 : i1 to i32
    %c0_i32_0 = arith.constant 0 : i32
    %4 = arith.cmpi ne, %3, %c0_i32_0 : i32
    scf.if %4 {
      %cst = arith.constant 0.000000e+00 : f32
      %8 = vector.broadcast %cst : f32 to vector<1x3x8x128xf32>
      %c0 = arith.constant 0 : index
      %c0_3 = arith.constant 0 : index
      %c0_4 = arith.constant 0 : index
      %c0_5 = arith.constant 0 : index
      %9 = vector.load %arg4[%c0, %c0_3, %c0_4, %c0_5] : memref<1x3x8x128xf32, #tpu.memory_space<vmem>>, vector<1x3x8x128xf32>
      tpu.vector_store %arg4[%c0, %c0_3, %c0_4, %c0_5], %8 {strides = array<i32>} : memref<1x3x8x128xf32, #tpu.memory_space<vmem>>, vector<1x3x8x128xf32>,
    } else {
    }
    %c1_i32_1 = arith.constant 1 : i32
    %5 = arith.cmpi slt, %1, %c1_i32_1 : i32
    %6 = arith.extui %5 : i1 to i32
    %c0_i32_2 = arith.constant 0 : i32
    %7 = arith.cmpi ne, %6, %c0_i32_2 : i32
    scf.if %7 {
      %c0 = arith.constant 0 : index
      %c0_3 = arith.constant 0 : index
      %8 = vector.load %arg2[%c0, %c0_3] : memref<16x128xf32, #tpu.memory_space<vmem>>, vector<16x128xf32>
      %c0_4 = arith.constant 0 : index
      %c0_5 = arith.constant 0 : index
      %9 = vector.load %arg3[%c0_4, %c0_5] : memref<16x128xf32, #tpu.memory_space<vmem>>, vector<16x128xf32>
      %c2048_i32 = arith.constant 2048 : i32
      %10 = arith.muli %1, %c2048_i32 : i32
      %c2048_i32_6 = arith.constant 2048 : i32
      %11 = arith.addi %10, %c2048_i32_6 : i32
      %c2048_i32_7 = arith.constant 2048 : i32
      %12 = arith.cmpi sle, %11, %c2048_i32_7 : i32
      %13 = arith.extui %12 : i1 to i32
      %c0_i32_8 = arith.constant 0 : i32
      %14 = arith.cmpi ne, %13, %c0_i32_8 : i32
      scf.if %14 {
        %cst = arith.constant 9.99999997E-7 : f32
        %cst_10 = arith.constant 0.999998986 : f32
        %18 = vector.broadcast %cst : f32 to vector<16x128xf32>
        %19 = arith.maximumf %18, %8 : vector<16x128xf32>
        %20 = vector.broadcast %cst_10 : f32 to vector<16x128xf32>
        %21 = arith.minimumf %20, %19 : vector<16x128xf32>
        %cst_11 = arith.constant 5.000000e-01 : f32
        %22 = vector.broadcast %cst_11 : f32 to vector<16x128xf32>
        %23 = arith.cmpf ogt, %9, %22 : vector<16x128xf32>
        %cst_12 = arith.constant 1.000000e+00 : f32
        %24 = vector.broadcast %cst_12 : f32 to vector<16x128xf32>
        %25 = arith.subf %24, %21 : vector<16x128xf32>
        %26 = arith.select %23, %21, %25 : vector<16x128xi1>, vector<16x128xf32>
        %c0_13 = arith.constant 0 : index
        %c0_14 = arith.constant 0 : index
        %c0_15 = arith.constant 0 : index
        %c0_16 = arith.constant 0 : index
        %27 = vector.load %arg4[%c0_13, %c0_14, %c0_15, %c0_16] : memref<1x3x8x128xf32, #tpu.memory_space<vmem>>, vector<1x1x8x128xf32>
        %28 = vector.shape_cast %27 : vector<1x1x8x128xf32> to vector<8x128xf32>
        %29 = math.log %26 : vector<16x128xf32>
        %cst_17 = arith.constant 0.000000e+00 : f32
        %30 = vector.broadcast %cst_17 : f32 to vector<16x128xf32>
        %31 = arith.subf %30, %29 : vector<16x128xf32>
        %32 = vector.shape_cast %31 : vector<16x128xf32> to vector<2x8x128xf32>
        %cst_18 = arith.constant dense<0.000000e+00> : vector<8x128xf32>
        %33 = vector.multi_reduction <add>, %32, %cst_18 [0] : vector<2x8x128xf32> to vector<8x128xf32>
        %34 = arith.addf %28, %33 : vector<8x128xf32>
        %c0_19 = arith.constant 0 : index
        %c0_20 = arith.constant 0 : index
        %c0_21 = arith.constant 0 : index
        %c0_22 = arith.constant 0 : index
        %35 = vector.load %arg4[%c0_19, %c0_20, %c0_21, %c0_22] : memref<1x3x8x128xf32, #tpu.memory_space<vmem>>, vector<1x1x8x128xf32>
        %36 = vector.shape_cast %35 : vector<1x1x8x128xf32> to vector<8x128xf32>
        %37 = vector.shape_cast %34 : vector<8x128xf32> to vector<1x1x8x128xf32>
        tpu.vector_store %arg4[%c0_19, %c0_20, %c0_21, %c0_22], %37 {strides = array<i32>} : memref<1x3x8x128xf32, #tpu.memory_space<vmem>>, vector<1x1x8x128xf32>,
        %c0_23 = arith.constant 0 : index
        %c1 = arith.constant 1 : index
        %c0_24 = arith.constant 0 : index
        %c0_25 = arith.constant 0 : index
        %38 = vector.load %arg4[%c0_23, %c1, %c0_24, %c0_25] : memref<1x3x8x128xf32, #tpu.memory_space<vmem>>, vector<1x1x8x128xf32>
        %39 = vector.shape_cast %38 : vector<1x1x8x128xf32> to vector<8x128xf32>
        %40 = arith.mulf %8, %9 : vector<16x128xf32>
        %41 = vector.shape_cast %40 : vector<16x128xf32> to vector<2x8x128xf32>
        %cst_26 = arith.constant dense<0.000000e+00> : vector<8x128xf32>
        %42 = vector.multi_reduction <add>, %41, %cst_26 [0] : vector<2x8x128xf32> to vector<8x128xf32>
        %43 = arith.addf %39, %42 : vector<8x128xf32>
        %c0_27 = arith.constant 0 : index
        %c1_28 = arith.constant 1 : index
        %c0_29 = arith.constant 0 : index
        %c0_30 = arith.constant 0 : index
        %44 = vector.load %arg4[%c0_27, %c1_28, %c0_29, %c0_30] : memref<1x3x8x128xf32, #tpu.memory_space<vmem>>, vector<1x1x8x128xf32>
        %45 = vector.shape_cast %44 : vector<1x1x8x128xf32> to vector<8x128xf32>
        %46 = vector.shape_cast %43 : vector<8x128xf32> to vector<1x1x8x128xf32>
        tpu.vector_store %arg4[%c0_27, %c1_28, %c0_29, %c0_30], %46 {strides = array<i32>} : memref<1x3x8x128xf32, #tpu.memory_space<vmem>>, vector<1x1x8x128xf32>,
        %c0_31 = arith.constant 0 : index
        %c2 = arith.constant 2 : index
        %c0_32 = arith.constant 0 : index
        %c0_33 = arith.constant 0 : index
        %47 = vector.load %arg4[%c0_31, %c2, %c0_32, %c0_33] : memref<1x3x8x128xf32, #tpu.memory_space<vmem>>, vector<1x1x8x128xf32>
        %48 = vector.shape_cast %47 : vector<1x1x8x128xf32> to vector<8x128xf32>
        %49 = arith.addf %8, %9 : vector<16x128xf32>
        %50 = vector.shape_cast %49 : vector<16x128xf32> to vector<2x8x128xf32>
        %cst_34 = arith.constant dense<0.000000e+00> : vector<8x128xf32>
        %51 = vector.multi_reduction <add>, %50, %cst_34 [0] : vector<2x8x128xf32> to vector<8x128xf32>
        %52 = arith.addf %48, %51 : vector<8x128xf32>
        %c0_35 = arith.constant 0 : index
        %c2_36 = arith.constant 2 : index
        %c0_37 = arith.constant 0 : index
        %c0_38 = arith.constant 0 : index
        %53 = vector.load %arg4[%c0_35, %c2_36, %c0_37, %c0_38] : memref<1x3x8x128xf32, #tpu.memory_space<vmem>>, vector<1x1x8x128xf32>
        %54 = vector.shape_cast %53 : vector<1x1x8x128xf32> to vector<8x128xf32>
        %55 = vector.shape_cast %52 : vector<8x128xf32> to vector<1x1x8x128xf32>
        tpu.vector_store %arg4[%c0_35, %c2_36, %c0_37, %c0_38], %55 {strides = array<i32>} : memref<1x3x8x128xf32, #tpu.memory_space<vmem>>, vector<1x1x8x128xf32>,
      } else {
      }
      %true = arith.constant true
      %15 = arith.xori %12, %true : i1
      %16 = arith.extui %15 : i1 to i32
      %c0_i32_9 = arith.constant 0 : i32
      %17 = arith.cmpi ne, %16, %c0_i32_9 : i32
      scf.if %17 {
        %c2048_i32_10 = arith.constant 2048 : i32
        %18 = arith.subi %c2048_i32_10, %10 : i32
        %19 = tpu.iota {dimensions = array<i32: 0>} : vector<16x128xi32>
        %20 = tpu.iota {dimensions = array<i32: 1>} : vector<16x128xi32>
        %c128_i32 = arith.constant 128 : i32
        %21 = vector.broadcast %c128_i32 : i32 to vector<16x128xi32>
        %22 = arith.muli %19, %21 : vector<16x128xi32>
        %23 = arith.addi %22, %20 : vector<16x128xi32>
        %24 = vector.broadcast %18 : i32 to vector<16x128xi32>
        %25 = arith.cmpi slt, %23, %24 : vector<16x128xi32>
        %cst = arith.constant 9.99999997E-7 : f32
        %cst_11 = arith.constant 0.999998986 : f32
        %26 = vector.broadcast %cst : f32 to vector<16x128xf32>
        %27 = arith.maximumf %26, %8 : vector<16x128xf32>
        %28 = vector.broadcast %cst_11 : f32 to vector<16x128xf32>
        %29 = arith.minimumf %28, %27 : vector<16x128xf32>
        %cst_12 = arith.constant 5.000000e-01 : f32
        %30 = vector.broadcast %cst_12 : f32 to vector<16x128xf32>
        %31 = arith.cmpf ogt, %9, %30 : vector<16x128xf32>
        %cst_13 = arith.constant 1.000000e+00 : f32
        %32 = vector.broadcast %cst_13 : f32 to vector<16x128xf32>
        %33 = arith.subf %32, %29 : vector<16x128xf32>
        %34 = arith.select %31, %29, %33 : vector<16x128xi1>, vector<16x128xf32>
        %cst_14 = arith.constant 1.000000e+00 : f32
        %35 = vector.broadcast %cst_14 : f32 to vector<16x128xf32>
        %36 = arith.select %25, %34, %35 : vector<16x128xi1>, vector<16x128xf32>
        %cst_15 = arith.constant 0.000000e+00 : f32
        %37 = vector.broadcast %cst_15 : f32 to vector<16x128xf32>
        %38 = arith.select %25, %8, %37 : vector<16x128xi1>, vector<16x128xf32>
        %cst_16 = arith.constant 0.000000e+00 : f32
        %39 = vector.broadcast %cst_16 : f32 to vector<16x128xf32>
        %40 = arith.select %25, %9, %39 : vector<16x128xi1>, vector<16x128xf32>
        %c0_17 = arith.constant 0 : index
        %c0_18 = arith.constant 0 : index
        %c0_19 = arith.constant 0 : index
        %c0_20 = arith.constant 0 : index
        %41 = vector.load %arg4[%c0_17, %c0_18, %c0_19, %c0_20] : memref<1x3x8x128xf32, #tpu.memory_space<vmem>>, vector<1x1x8x128xf32>
        %42 = vector.shape_cast %41 : vector<1x1x8x128xf32> to vector<8x128xf32>
        %43 = math.log %36 : vector<16x128xf32>
        %cst_21 = arith.constant 0.000000e+00 : f32
        %44 = vector.broadcast %cst_21 : f32 to vector<16x128xf32>
        %45 = arith.subf %44, %43 : vector<16x128xf32>
        %46 = vector.shape_cast %45 : vector<16x128xf32> to vector<2x8x128xf32>
        %cst_22 = arith.constant dense<0.000000e+00> : vector<8x128xf32>
        %47 = vector.multi_reduction <add>, %46, %cst_22 [0] : vector<2x8x128xf32> to vector<8x128xf32>
        %48 = arith.addf %42, %47 : vector<8x128xf32>
        %c0_23 = arith.constant 0 : index
        %c0_24 = arith.constant 0 : index
        %c0_25 = arith.constant 0 : index
        %c0_26 = arith.constant 0 : index
        %49 = vector.load %arg4[%c0_23, %c0_24, %c0_25, %c0_26] : memref<1x3x8x128xf32, #tpu.memory_space<vmem>>, vector<1x1x8x128xf32>
        %50 = vector.shape_cast %49 : vector<1x1x8x128xf32> to vector<8x128xf32>
        %51 = vector.shape_cast %48 : vector<8x128xf32> to vector<1x1x8x128xf32>
        tpu.vector_store %arg4[%c0_23, %c0_24, %c0_25, %c0_26], %51 {strides = array<i32>} : memref<1x3x8x128xf32, #tpu.memory_space<vmem>>, vector<1x1x8x128xf32>,
        %c0_27 = arith.constant 0 : index
        %c1 = arith.constant 1 : index
        %c0_28 = arith.constant 0 : index
        %c0_29 = arith.constant 0 : index
        %52 = vector.load %arg4[%c0_27, %c1, %c0_28, %c0_29] : memref<1x3x8x128xf32, #tpu.memory_space<vmem>>, vector<1x1x8x128xf32>
        %53 = vector.shape_cast %52 : vector<1x1x8x128xf32> to vector<8x128xf32>
        %54 = arith.mulf %38, %40 : vector<16x128xf32>
        %55 = vector.shape_cast %54 : vector<16x128xf32> to vector<2x8x128xf32>
        %cst_30 = arith.constant dense<0.000000e+00> : vector<8x128xf32>
        %56 = vector.multi_reduction <add>, %55, %cst_30 [0] : vector<2x8x128xf32> to vector<8x128xf32>
        %57 = arith.addf %53, %56 : vector<8x128xf32>
        %c0_31 = arith.constant 0 : index
        %c1_32 = arith.constant 1 : index
        %c0_33 = arith.constant 0 : index
        %c0_34 = arith.constant 0 : index
        %58 = vector.load %arg4[%c0_31, %c1_32, %c0_33, %c0_34] : memref<1x3x8x128xf32, #tpu.memory_space<vmem>>, vector<1x1x8x128xf32>
        %59 = vector.shape_cast %58 : vector<1x1x8x128xf32> to vector<8x128xf32>
        %60 = vector.shape_cast %57 : vector<8x128xf32> to vector<1x1x8x128xf32>
        tpu.vector_store %arg4[%c0_31, %c1_32, %c0_33, %c0_34], %60 {strides = array<i32>} : memref<1x3x8x128xf32, #tpu.memory_space<vmem>>, vector<1x1x8x128xf32>,
        %c0_35 = arith.constant 0 : index
        %c2 = arith.constant 2 : index
        %c0_36 = arith.constant 0 : index
        %c0_37 = arith.constant 0 : index
        %61 = vector.load %arg4[%c0_35, %c2, %c0_36, %c0_37] : memref<1x3x8x128xf32, #tpu.memory_space<vmem>>, vector<1x1x8x128xf32>
        %62 = vector.shape_cast %61 : vector<1x1x8x128xf32> to vector<8x128xf32>
        %63 = arith.addf %38, %40 : vector<16x128xf32>
        %64 = vector.shape_cast %63 : vector<16x128xf32> to vector<2x8x128xf32>
        %cst_38 = arith.constant dense<0.000000e+00> : vector<8x128xf32>
        %65 = vector.multi_reduction <add>, %64, %cst_38 [0] : vector<2x8x128xf32> to vector<8x128xf32>
        %66 = arith.addf %62, %65 : vector<8x128xf32>
        %c0_39 = arith.constant 0 : index
        %c2_40 = arith.constant 2 : index
        %c0_41 = arith.constant 0 : index
        %c0_42 = arith.constant 0 : index
        %67 = vector.load %arg4[%c0_39, %c2_40, %c0_41, %c0_42] : memref<1x3x8x128xf32, #tpu.memory_space<vmem>>, vector<1x1x8x128xf32>
        %68 = vector.shape_cast %67 : vector<1x1x8x128xf32> to vector<8x128xf32>
        %69 = vector.shape_cast %66 : vector<8x128xf32> to vector<1x1x8x128xf32>
        tpu.vector_store %arg4[%c0_39, %c2_40, %c0_41, %c0_42], %69 {strides = array<i32>} : memref<1x3x8x128xf32, #tpu.memory_space<vmem>>, vector<1x1x8x128xf32>,
      } else {
      }
    } else {
    }
    return
  }
  func.func @transform_0(%arg0: i32, %arg1: i32) -> (i32, i32) {
    %c1_i32 = arith.constant 1 : i32
    %0 = arith.muli %arg0, %c1_i32 : i32
    %1 = arith.addi %0, %arg1 : i32
    %c0_i32 = arith.constant 0 : i32
    %2 = arith.minsi %1, %c0_i32 : i32
    %c0_i32_0 = arith.constant 0 : i32
    %c0_i32_1 = arith.constant 0 : i32
    return %2, %c0_i32_0 : i32, i32
  }
  func.func @transform_1(%arg0: i32, %arg1: i32) -> (i32, i32) {
    %c1_i32 = arith.constant 1 : i32
    %0 = arith.muli %arg0, %c1_i32 : i32
    %1 = arith.addi %0, %arg1 : i32
    %c0_i32 = arith.constant 0 : i32
    %2 = arith.minsi %1, %c0_i32 : i32
    %c0_i32_0 = arith.constant 0 : i32
    %c0_i32_1 = arith.constant 0 : i32
    return %2, %c0_i32_0 : i32, i32
  }
  func.func @transform_2(%arg0: i32, %arg1: i32) -> (i32, i32, i32, i32) {
    %c0_i32 = arith.constant 0 : i32
    %c0_i32_0 = arith.constant 0 : i32
    %c0_i32_1 = arith.constant 0 : i32
    %c0_i32_2 = arith.constant 0 : i32
    return %arg0, %c0_i32, %c0_i32_0, %c0_i32_1 : i32, i32, i32, i32
  }
}

</mosaic_0001>

<llo_original>
// kernel: tpu_custom_call.1
$region0: #{tpu_custom_call.1}
  #allocation0 [shape = 'u32[]', space=smem, size = 0x4, offset = 0x4, fixed_abs, tag = 'smem constant byte address 0x4 - core index']
  #allocation1 [shape = 'u32[144,128]{1,0:T(1,128)}', space=vmem, size = 0x12000, scoped, tag = 'internal scratch']
  %s0 = inlined_call_operand.hbm [shape: f32[16,128], index: 0, kind: input, shape index: {}]
  %s1 = inlined_call_operand.hbm [shape: f32[16,128], index: 1, kind: input, shape index: {}]
  %s2 = inlined_call_operand.hbm [shape: f32[2,3,8,128], index: 2, kind: output, shape index: {}]
  %s3 = sld [smem:[#allocation0]]
  $region65: #{tpu_custom_call.1} parent=0
    _
  %s5 = ssub.s32 1, %s3
  %s6 = scalar_select 0, %s5, %s3
  $region1: #{tpu_custom_call.1} parent=0
    #allocation2 [shape = 'u8[16384]{0}', space=vmem, size = 0x4000, scoped, tag = 'input window, operand 0']
    #allocation3 [shape = 's32[2]{0}', space=sflag, size = 0x8, scoped, tag = 'scoped memory for tpu_custom_call.1']
    #allocation4 [shape = 's32[2]{0}', space=sflag, size = 0x8, scoped, tag = 'scoped memory for tpu_custom_call.1']
    #allocation5 [shape = 'u8[16384]{0}', space=vmem, size = 0x4000, scoped, tag = 'input window, operand 1']
    #allocation6 [shape = 's32[2]{0}', space=sflag, size = 0x8, scoped, tag = 'scoped memory for tpu_custom_call.1']
    #allocation7 [shape = 'u8[24576]{0}', space=vmem, size = 0x6000, scoped, tag = 'output window, operand 0']
    %7 = vsyncpa [#allocation3], 0
    %s8 = scalar_lea.sflag [#allocation3], 1
    %9 = vsyncpa %s8, 0
    %10 = vsyncpa [#allocation6], 0
    %s11 = scalar_lea.sflag [#allocation6], 1
    %12 = vsyncpa %s11, 0
    %13 = vsyncpa [#allocation4], 0
    %s14 = scalar_lea.sflag [#allocation4], 1
    %15 = vsyncpa %s14, 0
    loop: start=0, step=1, limit=4
    $region2: #{tpu_custom_call.1} parent=1 // loop_pre_header
      _
    $region3: #{tpu_custom_call.1} parent=1 // loop_header
      %s17 = sphi 0, %s21
      %p18 = scmp.ge.s32.totalorder %s17, 4
      %s24 = sphi 0, %s36
      %s25 = sphi 0, %s32
      %s26 = sphi 0, %s24
      %s27 = sphi 0, %s25
      %s28 = sphi 0, %s26
      %s29 = sphi 0, %s27
      %s45 = sphi 0, %s47
      %s48 = sphi 0, %s45
      %s49 = sphi 0, %s48
      %s65 = sphi 0, %s49
      %s77 = sphi 0, %s79
      %s80 = sphi 0, %s77
      %s81 = sphi 0, %s80
      %s97 = sphi 0, %s81
      %s103 = sphi 0, %s105
      %s106 = sphi 0, %s103
      %s107 = sphi 0, %s106
      %s123 = sphi 0, %s107
    $region4: #{tpu_custom_call.1} parent=1 // loop_header_branch
      %20 = sbr.rel (%p18) target = $region8
    $region5: #{tpu_custom_call.1} parent=1 // loop_body
      %s22 = ssub.s32 %s17, 1
      %s23 = ssub.s32 %s17, 2
      %s30 = sadd.s32 1, %s25
      %p31 = scmp.ge.s32.totalorder %s30, 1
      %s32 = scalar_select %p31, 0, %s30
      %s33 = sadd.s32 1, %s24
      %s34 = scalar_select %p31, %s33, %s24
      %p35 = scmp.ge.s32.totalorder %s34, 2
      %s36 = scalar_select %p35, 0, %s34
      %s37 = sadd.s32 %s24, %s25
      %p38 = scmp.lt.s32.totalorder %s37, 0
      %s39 = scalar_select %p38, %s37, 0
      %s40 = sadd.s32 %s36, %s32
      %p41 = scmp.lt.s32.totalorder %s40, 0
      %s42 = scalar_select %p41, %s40, 0
      %s43 = ssub.s32 %s39, %s42
      %p44 = scmp.eq.s32.totalorder %s43, 0
      %s46 = sadd.s32 %s45, 1
      %s47 = scalar_select %p44, %s45, %s46
      %p50 = pneg %p44
      %p51 = scmp.eq.s32.totalorder %s17, 1
      %p52 = por %p50, %p51
      %p53 = scmp.ne.s32.totalorder %s45, %s48
      %p54 = scmp.eq.s32.totalorder %s17, 0
      %p55 = por %p53, %p54
      %p56 = scmp.ne.s32.totalorder %s45, %s48
      %p57 = scmp.eq.s32.totalorder %s22, 1
      %p58 = por %p56, %p57
      %p59 = scmp.ne.s32.totalorder %s48, %s49
      %p60 = scmp.eq.s32.totalorder %s22, 0
      %p61 = por %p59, %p60
      %p62 = scmp.ne.s32.totalorder %s48, %s49
      %p63 = scmp.eq.s32.totalorder %s23, 1
      %p64 = por %p62, %p63
      %p66 = scmp.ne.s32.totalorder %s49, %s65
      %p67 = scmp.eq.s32.totalorder %s23, 0
      %p68 = por %p66, %p67
      %s69 = sadd.s32 %s24, %s25
      %p70 = scmp.lt.s32.totalorder %s69, 0
      %s71 = scalar_select %p70, %s69, 0
      %s72 = sadd.s32 %s36, %s32
      %p73 = scmp.lt.s32.totalorder %s72, 0
      %s74 = scalar_select %p73, %s72, 0
      %s75 = ssub.s32 %s71, %s74
      %p76 = scmp.eq.s32.totalorder %s75, 0
      %s78 = sadd.s32 %s77, 1
      %s79 = scalar_select %p76, %s77, %s78
      %p82 = pneg %p76
      %p83 = scmp.eq.s32.totalorder %s17, 1
      %p84 = por %p82, %p83
      %p85 = scmp.ne.s32.totalorder %s77, %s80
      %p86 = scmp.eq.s32.totalorder %s17, 0
      %p87 = por %p85, %p86
      %p88 = scmp.ne.s32.totalorder %s77, %s80
      %p89 = scmp.eq.s32.totalorder %s22, 1
      %p90 = por %p88, %p89
      %p91 = scmp.ne.s32.totalorder %s80, %s81
      %p92 = scmp.eq.s32.totalorder %s22, 0
      %p93 = por %p91, %p92
      %p94 = scmp.ne.s32.totalorder %s80, %s81
      %p95 = scmp.eq.s32.totalorder %s23, 1
      %p96 = por %p94, %p95
      %p98 = scmp.ne.s32.totalorder %s81, %s97
      %p99 = scmp.eq.s32.totalorder %s23, 0
      %p100 = por %p98, %p99
      %s101 = ssub.s32 %s24, %s36
      %p102 = scmp.eq.s32.totalorder %s101, 0
      %s104 = sadd.s32 %s103, 1
      %s105 = scalar_select %p102, %s103, %s104
      %p108 = pneg %p102
      %p109 = scmp.eq.s32.totalorder %s17, 1
      %p110 = por %p108, %p109
      %p111 = scmp.ne.s32.totalorder %s103, %s106
      %p112 = scmp.eq.s32.totalorder %s17, 0
      %p113 = por %p111, %p112
      %p114 = scmp.ne.s32.totalorder %s103, %s106
      %p115 = scmp.eq.s32.totalorder %s22, 1
      %p116 = por %p114, %p115
      %p117 = scmp.ne.s32.totalorder %s106, %s107
      %p118 = scmp.eq.s32.totalorder %s22, 0
      %p119 = por %p117, %p118
      %p120 = scmp.ne.s32.totalorder %s106, %s107
      %p121 = scmp.eq.s32.totalorder %s23, 1
      %p122 = por %p120, %p121
      %p124 = scmp.ne.s32.totalorder %s107, %s123
      %p125 = scmp.eq.s32.totalorder %s23, 0
      %p126 = por %p124, %p125
      %p127 = scmp.le.s32.totalorder 1, %s17
      %p128 = scmp.lt.s32.totalorder %s17, 3
      %p129 = pnand %p127, %p128
      %p130 = pneg %p129
      // Predicated region
      $region9: #{tpu_custom_call.1} parent=5 // pred_check
        _
      $region10: #{tpu_custom_call.1} parent=5 // pred_check_branch
        %132 = sbr.rel (%p129) target = $region12
      $region11: #{tpu_custom_call.1} parent=5 // pred_region
        %s133 = ssub.s32 %s17, 1
      $region12: #{tpu_custom_call.1} parent=5 // pred_fallthru
        _
      %p134 = scmp.lt.s32.totalorder %s17, 2
      // Predicated region
      $region13: #{tpu_custom_call.1} parent=5 // pred_check
        %p135 = pneg %p134
      $region14: #{tpu_custom_call.1} parent=5 // pred_check_branch
        %137 = sbr.rel (%p135) target = $region16
      $region15: #{tpu_custom_call.1} parent=5 // pred_region
        // Predicated region
        $region17: #{tpu_custom_call.1} parent=15 // pred_check
          %p138 = pneg %p55
        $region18: #{tpu_custom_call.1} parent=15 // pred_check_branch
          %140 = sbr.rel (%p138) target = $region20
        $region19: #{tpu_custom_call.1} parent=15 // pred_region
          %s141 = sand.u32 %s45, 1
          %s142 = scalar_lea.sflag [#allocation3], %s141
          %s143 = sand.u32 %s45, 1
          %s144 = smul.addr %s143, 16
          %s145 = scalar_lea.vmem [#allocation2], %s144
          %s146 = sadd.s32 %s24, %s25
          %p147 = scmp.lt.s32.totalorder %s146, 0
          %s148 = scalar_select %p147, %s146, 0
          %s149 = smul.u32 2, %s148
          %s151 = ssub.s32 256, 256
          %152 = vsyncadd %s142, %s151
          %s153 = smul.addr %s149, 128
          %s154 = scalar_lea.hbm %s0, %s153
          %s155 = sshll.u32 %s145, 4
          %s156 = int_to_ptr.vmem [resolvable:$true] %s155
          %161 = dma.hbm_to_vmem [thread:$0]  %s154, 256, %s156, %s142, 128, 128, 8
        $region20: #{tpu_custom_call.1} parent=15 // pred_fallthru
          _
        // Predicated region
        $region21: #{tpu_custom_call.1} parent=15 // pred_check
          %p162 = pneg %p87
        $region22: #{tpu_custom_call.1} parent=15 // pred_check_branch
          %164 = sbr.rel (%p162) target = $region24
        $region23: #{tpu_custom_call.1} parent=15 // pred_region
          %s165 = sand.u32 %s77, 1
          %s166 = scalar_lea.sflag [#allocation6], %s165
          %s167 = sand.u32 %s77, 1
          %s168 = smul.addr %s167, 16
          %s169 = scalar_lea.vmem [#allocation5], %s168
          %s170 = sadd.s32 %s24, %s25
          %p171 = scmp.lt.s32.totalorder %s170, 0
          %s172 = scalar_select %p171, %s170, 0
          %s173 = smul.u32 2, %s172
          %s175 = ssub.s32 256, 256
          %176 = vsyncadd %s166, %s175
          %s177 = smul.addr %s173, 128
          %s178 = scalar_lea.hbm %s1, %s177
          %s179 = sshll.u32 %s169, 4
          %s180 = int_to_ptr.vmem [resolvable:$true] %s179
          %185 = dma.hbm_to_vmem [thread:$0]  %s178, 256, %s180, %s166, 128, 128, 8
        $region24: #{tpu_custom_call.1} parent=15 // pred_fallthru
          _
      $region16: #{tpu_custom_call.1} parent=5 // pred_fallthru
        _
      %p186 = scmp.le.s32.totalorder 1, %s17
      %p187 = scmp.lt.s32.totalorder %s17, 3
      %p188 = pnand %p186, %p187
      %p189 = pneg %p188
      // Predicated region
      $region25: #{tpu_custom_call.1} parent=5 // pred_check
        _
      $region26: #{tpu_custom_call.1} parent=5 // pred_check_branch
        %191 = sbr.rel (%p188) target = $region28
      $region27: #{tpu_custom_call.1} parent=5 // pred_region
        %s192 = ssub.s32 %s17, 1
        %s193 = sand.u32 %s48, 1
        %s194 = scalar_lea.sflag [#allocation3], %s193
        %s195 = sand.u32 %s48, 1
        %s196 = smul.addr %s195, 16
        %s197 = scalar_lea.vmem [#allocation2], %s196
        // Predicated region
        $region29: #{tpu_custom_call.1} parent=27 // pred_check
          %p198 = pneg %p61
        $region30: #{tpu_custom_call.1} parent=27 // pred_check_branch
          %200 = sbr.rel (%p198) target = $region32
        $region31: #{tpu_custom_call.1} parent=27 // pred_region
          %201 = dma.done %s194, 256
        $region32: #{tpu_custom_call.1} parent=27 // pred_fallthru
          _
        %s202 = sand.u32 %s80, 1
        %s203 = scalar_lea.sflag [#allocation6], %s202
        %s204 = sand.u32 %s80, 1
        %s205 = smul.addr %s204, 16
        %s206 = scalar_lea.vmem [#allocation5], %s205
        // Predicated region
        $region33: #{tpu_custom_call.1} parent=27 // pred_check
          %p207 = pneg %p93
        $region34: #{tpu_custom_call.1} parent=27 // pred_check_branch
          %209 = sbr.rel (%p207) target = $region36
        $region35: #{tpu_custom_call.1} parent=27 // pred_region
          %210 = dma.done %s203, 256
        $region36: #{tpu_custom_call.1} parent=27 // pred_fallthru
          _
        %s211 = sand.u32 %s48, 1
        %s212 = scalar_lea.sflag [#allocation3], %s211
        %s213 = sand.u32 %s48, 1
        %s214 = smul.addr %s213, 16
        %s215 = scalar_lea.vmem [#allocation2], %s214
        %p216 = pneg %p61
        %p217 = pneg %p58
        %s218 = sand.u32 %s80, 1
        %s219 = scalar_lea.sflag [#allocation6], %s218
        %s220 = sand.u32 %s80, 1
        %s221 = smul.addr %s220, 16
        %s222 = scalar_lea.vmem [#allocation5], %s221
        %p223 = pneg %p93
        %p224 = pneg %p90
        %p225 = pneg %p119
        %p226 = pneg %p116
        %s227 = sand.u32 %s106, 1
        %s228 = scalar_lea.sflag [#allocation4], %s227
        %s229 = sand.u32 %s106, 1
        %s230 = smul.addr %s229, 24
        %s231 = scalar_lea.vmem [#allocation7], %s230
        %s232 = sadd.s32 %s26, %s27
        %p233 = scmp.lt.s32.totalorder %s232, 0
        %s234 = scalar_select %p233, %s232, 0
        %s235 = smul.u32 2, %s234
        %s236 = sadd.s32 %s26, %s27
        %p237 = scmp.lt.s32.totalorder %s236, 0
        %s238 = scalar_select %p237, %s236, 0
        %s239 = smul.u32 2, %s238
        %s240 = sadd.s32 %s26, %s27
        %p241 = scmp.eq.s32.totalorder %s27, 0
        // Predicated region
        $region37: #{tpu_custom_call.1} parent=27 // pred_check
          %p242 = pneg %p241
        $region38: #{tpu_custom_call.1} parent=27 // pred_check_branch
          %244 = sbr.rel (%p242) target = $region40
        $region39: #{tpu_custom_call.1} parent=27 // pred_region
          %245 = vst [vmem:[%s231] sm:$0xff] 0.0
          %246 = vst [vmem:[%s231 + $0x8] sm:$0xff] 0.0
          %247 = vst [vmem:[%s231 + $0x10] sm:$0xff] 0.0
        $region40: #{tpu_custom_call.1} parent=27 // pred_fallthru
          _
        %p248 = scmp.lt.s32.totalorder %s240, 1
        // Predicated region
        $region41: #{tpu_custom_call.1} parent=27 // pred_check
          %p249 = pneg %p248
        $region42: #{tpu_custom_call.1} parent=27 // pred_check_branch
          %251 = sbr.rel (%p249) target = $region44
        $region43: #{tpu_custom_call.1} parent=27 // pred_region
          %v252 = vld [vmem:[%s197] sm:$0xff]
          %v253 = vld [vmem:[%s197 + $0x8] sm:$0xff]
          %v254 = vld [vmem:[%s206] sm:$0xff]
          %v255 = vld [vmem:[%s206 + $0x8] sm:$0xff]
          %s256 = smul.u32 %s240, 2048
          %s257 = sadd.s32 %s256, 2048
          %p258 = scmp.le.s32.totalorder %s257, 2048
          // Predicated region
          $region45: #{tpu_custom_call.1} parent=43 // pred_check
            %p259 = pneg %p258
          $region46: #{tpu_custom_call.1} parent=43 // pred_check_branch
            %261 = sbr.rel (%p259) target = $region48
          $region47: #{tpu_custom_call.1} parent=43 // pred_region
            %v262 = vmax.f32 %v252, 1e-06
            %v263 = vmax.f32 %v253, 1e-06
            %v264 = vmin.f32 %v262, 0.999999
            %v265 = vmin.f32 %v263, 0.999999
            %vm266 = vcmp.gt.f32.partialorder %v254, 0.5
            %vm267 = vcmp.gt.f32.partialorder %v255, 0.5
            %v268 = vsub.f32 1.0, %v264
            %v269 = vsub.f32 1.0, %v265
            %v270 = vsel %vm266, %v264, %v268
            %v271 = vsel %vm267, %v265, %v269
            %v272 = vld [vmem:[%s231] sm:$0xff]
            %v273 = vlog2.pop %v270
            %v274 = vmul.f32 %v273, 0.6931472
            %v275 = vlog2.pop %v271
            %v276 = vmul.f32 %v275, 0.6931472
            %v277 = vsub.f32 0.0, %v274
            %v278 = vsub.f32 0.0, %v276
            %v279 = vadd.f32 %v277, %v278
            %v280 = vadd.f32 %v272, %v279
            %281 = vst [vmem:[%s231] sm:$0xff] %v280
            %s282 = scalar_lea.vmem %s231, 8 [#allocation7]
            %v283 = vld [vmem:[%s282] sm:$0xff]
            %v284 = vmul.f32 %v252, %v254
            %v285 = vmul.f32 %v253, %v255
            %v286 = vadd.f32 %v284, %v285
            %v287 = vadd.f32 %v283, %v286
            %288 = vst [vmem:[%s282] sm:$0xff] %v287
            %s289 = scalar_lea.vmem %s231, 16 [#allocation7]
            %v290 = vld [vmem:[%s289] sm:$0xff]
            %v291 = vadd.f32 %v252, %v254
            %v292 = vadd.f32 %v253, %v255
            %v293 = vadd.f32 %v291, %v292
            %v294 = vadd.f32 %v290, %v293
            %295 = vst [vmem:[%s289] sm:$0xff] %v294
          $region48: #{tpu_custom_call.1} parent=43 // pred_fallthru
            _
          %p296 = scmp.gt.s32.totalorder %s257, 2048
          // Predicated region
          $region49: #{tpu_custom_call.1} parent=43 // pred_check
            %p297 = pneg %p296
          $region50: #{tpu_custom_call.1} parent=43 // pred_check_branch
            %299 = sbr.rel (%p297) target = $region52
          $region51: #{tpu_custom_call.1} parent=43 // pred_region
            %s300 = ssub.s32 2048, %s256
            %v301 = vlaneseq
            %v302 = vshrl.u32 %v301, 7
            %v303 = vadd.s32 %v302, 8
            %v304 = vlaneseq
            %v305 = vand.u32 %v304, 127
            %v306 = vmul.u32 %v302, 128
            %v307 = vmul.u32 %v303, 128
            %v308 = vadd.s32 %v306, %v305
            %v309 = vadd.s32 %v307, %v305
            %v310 = vstv %s300
            %vm311 = vcmp.lt.s32.totalorder %v308, %v310
            %vm312 = vcmp.lt.s32.totalorder %v309, %v310
            %v313 = vmax.f32 %v252, 1e-06
            %v314 = vmax.f32 %v253, 1e-06
            %v315 = vmin.f32 %v313, 0.999999
            %v316 = vmin.f32 %v314, 0.999999
            %vm317 = vcmp.gt.f32.partialorder %v254, 0.5
            %vm318 = vcmp.gt.f32.partialorder %v255, 0.5
            %v319 = vsub.f32 1.0, %v315
            %v320 = vsub.f32 1.0, %v316
            %v321 = vsel %vm317, %v315, %v319
            %v322 = vsel %vm318, %v316, %v320
            %v323 = vsel %vm311, %v321, 1.0
            %v324 = vsel %vm312, %v322, 1.0
            %v325 = vsel %vm311, %v252, 0.0
            %v326 = vsel %vm312, %v253, 0.0
            %v327 = vsel %vm311, %v254, 0.0
            %v328 = vsel %vm312, %v255, 0.0
            %v329 = vld [vmem:[%s231] sm:$0xff]
            %v330 = vlog2.pop %v323
            %v331 = vmul.f32 %v330, 0.6931472
            %v332 = vlog2.pop %v324
            %v333 = vmul.f32 %v332, 0.6931472
            %v334 = vsub.f32 0.0, %v331
            %v335 = vsub.f32 0.0, %v333
            %v336 = vadd.f32 %v334, %v335
            %v337 = vadd.f32 %v329, %v336
            %338 = vst [vmem:[%s231] sm:$0xff] %v337
            %s339 = scalar_lea.vmem %s231, 8 [#allocation7]
            %v340 = vld [vmem:[%s339] sm:$0xff]
            %v341 = vmul.f32 %v325, %v327
            %v342 = vmul.f32 %v326, %v328
            %v343 = vadd.f32 %v341, %v342
            %v344 = vadd.f32 %v340, %v343
            %345 = vst [vmem:[%s339] sm:$0xff] %v344
            %s346 = scalar_lea.vmem %s231, 16 [#allocation7]
            %v347 = vld [vmem:[%s346] sm:$0xff]
            %v348 = vadd.f32 %v325, %v327
            %v349 = vadd.f32 %v326, %v328
            %v350 = vadd.f32 %v348, %v349
            %v351 = vadd.f32 %v347, %v350
            %352 = vst [vmem:[%s346] sm:$0xff] %v351
          $region52: #{tpu_custom_call.1} parent=43 // pred_fallthru
            _
        $region44: #{tpu_custom_call.1} parent=27 // pred_fallthru
          _
        %s353 = sand.u32 %s106, 1
        %s354 = scalar_lea.sflag [#allocation4], %s353
        %s355 = sand.u32 %s106, 1
        %s356 = smul.addr %s355, 24
        %s357 = scalar_lea.vmem [#allocation7], %s356
        // Predicated region
        $region53: #{tpu_custom_call.1} parent=27 // pred_check
          %p358 = pneg %p116
        $region54: #{tpu_custom_call.1} parent=27 // pred_check_branch
          %360 = sbr.rel (%p358) target = $region56
        $region55: #{tpu_custom_call.1} parent=27 // pred_region
          %s362 = ssub.s32 384, 384
          %363 = vsyncadd %s354, %s362
          %s364 = smul.addr %s26, 3
          %s365 = smul.addr %s364, 128
          %s366 = scalar_lea.hbm %s2, %s365
          %s367 = sshll.u32 %s357, 4
          %s368 = int_to_ptr.vmem [resolvable:$true] %s367
          %373 = dma.vmem_to_hbm [thread:$0]  %s368, 384, %s366, %s354, 128, 128, 8
        $region56: #{tpu_custom_call.1} parent=27 // pred_fallthru
          _
      $region28: #{tpu_custom_call.1} parent=5 // pred_fallthru
        _
      %p374 = scmp.le.s32.totalorder 2, %s17
      // Predicated region
      $region57: #{tpu_custom_call.1} parent=5 // pred_check
        %p375 = pneg %p374
      $region58: #{tpu_custom_call.1} parent=5 // pred_check_branch
        %377 = sbr.rel (%p375) target = $region60
      $region59: #{tpu_custom_call.1} parent=5 // pred_region
        %s378 = ssub.s32 %s17, 2
        // Predicated region
        $region61: #{tpu_custom_call.1} parent=59 // pred_check
          %p379 = pneg %p122
        $region62: #{tpu_custom_call.1} parent=59 // pred_check_branch
          %381 = sbr.rel (%p379) target = $region64
        $region63: #{tpu_custom_call.1} parent=59 // pred_region
          %s382 = sand.u32 %s107, 1
          %s383 = scalar_lea.sflag [#allocation4], %s382
          %s384 = sand.u32 %s107, 1
          %s385 = smul.addr %s384, 24
          %s386 = scalar_lea.vmem [#allocation7], %s385
          %387 = dma.done %s383, 384
        $region64: #{tpu_custom_call.1} parent=59 // pred_fallthru
          _
      $region60: #{tpu_custom_call.1} parent=5 // pred_fallthru
        _
    $region6: #{tpu_custom_call.1} parent=1 // loop_footer
      %s21 = sadd.s32 1, %s17
    $region7: #{tpu_custom_call.1} parent=1 // loop_footer_branch
      %16 = sbr.rel target = $region3
    $region8: #{tpu_custom_call.1} parent=1 // loop_exit
      _
    %388 = vsyncpa [#allocation3], 1
    %s389 = scalar_lea.sflag [#allocation3], 1
    %390 = vsyncpa %s389, 1
    %391 = vsyncpa [#allocation6], 1
    %s392 = scalar_lea.sflag [#allocation6], 1
    %393 = vsyncpa %s392, 1
    %394 = vsyncpa [#allocation4], 1
    %s395 = scalar_lea.sflag [#allocation4], 1
    %396 = vsyncpa %s395, 1

</llo_original>
